<compile_context>
chip_gen: v7x
topology: tpu7x:2x2x1
jax: 0.10.0
libtpu: 0.0.40
codegen_flags: <defaults>
</compile_context>

<pallas_src>
import functools

import numpy as np
import jax
import jax.numpy as jnp
from jax import lax
from jax.experimental import pallas as pl
from jax.experimental.pallas import tpu as pltpu


def _reduce_leading(v, op):
    """Reduce a (C, ...) value over axis 0 with a static halving tree.

    Uses only static leading-dim slices + elementwise ops (log2(C) traced ops),
    returning shape (1, ...)."""
    c = v.shape[0]
    extra = None
    while c > 1:
        h = c // 2
        if c % 2:
            tail = v[c - 1:c]
            extra = tail if extra is None else op(extra, tail)
        v = op(v[:h], v[h:2 * h])
        c = h
    if extra is not None:
        v = op(v, extra)
    return v


def _frame_att_kernel(batch, inv_cv, x_ref, wa_ref, wm_ref, b1_ref, w2_ref,
                      b2_ref, o_ref):
    """Fused pass over `batch` samples: pool -> temporal convs -> softmax -> apply."""
    for i in range(batch):                         # static unroll over samples in block
        xi = x_ref[i]                              # (C, T, V), input dtype

        # AdaptiveAvgPool2d(1) / AdaptiveMaxPool2d(1) over the (C, V) plane,
        # keeping T on the sublane axis throughout (no relayouts needed).
        s = jnp.sum(xi.astype(jnp.float32), axis=2, keepdims=True)   # (C, T, 1)
        avg = _reduce_leading(s, jnp.add)[0] * inv_cv                 # (T, 1)
        m = jnp.max(xi, axis=2, keepdims=True)                        # (C, T, 1)
        mx = _reduce_leading(m, jnp.maximum)[0].astype(jnp.float32)   # (T, 1)

        # Conv2d(2, 1, (7,1), padding=(3,0)) with eval-mode BatchNorm folded in, + ReLU.
        y = (jnp.dot(wa_ref[...], avg, preferred_element_type=jnp.float32)
             + jnp.dot(wm_ref[...], mx, preferred_element_type=jnp.float32)
             + b1_ref[...])                                           # (T, 1)
        y = jnp.maximum(y, 0.0)

        # Conv2d(1, 1, (9,1), padding=(4,0)).
        z = (jnp.dot(w2_ref[...], y, preferred_element_type=jnp.float32)
             + b2_ref[...])                                           # (T, 1)

        # Softmax(dim=1) over a size-1 channel dim: exp(z - z) == 1 for finite z,
        # NaN/Inf propagate like torch.nn.Softmax.
        scale = jnp.exp(z - z) + 1.0                                  # att + 1, (T, 1)

        # res = orig * att + orig, att broadcast over (C, V).
        o_ref[i] = xi * scale[None].astype(xi.dtype)                  # (C, T, V)


def _band_matrix(taps, t_len, pad):
    """(T, T) matrix A with (A @ v)[t] = sum_k taps[k] * v[t + k - pad] (zero-padded)."""
    k_len = int(taps.shape[0])
    shifts = np.stack([np.eye(t_len, t_len, k - pad, dtype=np.float32)
                       for k in range(k_len)])            # (K, T, T)
    return jnp.einsum('k,kab->ab', taps.astype(jnp.float32), jnp.asarray(shifts))


def frame_att_pallas(x, params, *, eps=1e-5):
    N, C, T, V = x.shape
    CV = C * V
    itemsize = jnp.dtype(x.dtype).itemsize
    per_sample = C * T * V * itemsize               # one sample's HBM block
    per_sample_f32 = C * T * V * 4                  # in-kernel f32 cast temp
    weights_vmem = 2 * 3 * T * T * 4                # 3 (T,T) f32 inputs, double-buffered

    # Per-generation VMEM budget (v5e/v6e 128 MiB, v7x 64 MiB) minus headroom.
    try:
        vmem_cap = int(getattr(pltpu.get_tpu_info(), "vmem_capacity_bytes", 0)) or (64 << 20)
    except Exception:
        vmem_cap = 64 << 20
    budget = vmem_cap - (8 << 20)

    def footprint(b):   # double-buffered in+out blocks + weights + temps + slack
        return 4 * b * per_sample + weights_vmem + 2 * per_sample_f32 + (2 << 20)

    # Per-step sample batch b: largest divisor of N that keeps blocks ~<=1 MiB,
    # keeps >=2 grid steps when N >= 2 (both v7x TensorCores busy), keeps the
    # static in-kernel unroll small, and fits the VMEM budget.
    cap = max(1, min(16, (1 << 20) // max(per_sample, 1)))
    if N >= 2:
        cap = min(cap, N // 2)
    cap = max(1, min(cap, N))
    b = max(d for d in range(1, cap + 1) if N % d == 0)
    while b > 1 and footprint(b) > budget:
        b = max(d for d in range(1, b) if N % d == 0)
    # TODO(synk): if footprint(1) still exceeds the VMEM budget (very large C*T*V
    # planes, esp. v7x's 64 MiB), split into a pooled-reduce pass + lane-tiled
    # apply pass instead of one fused block per sample.
    vmem_limit = int(min(budget, max(footprint(b), 32 << 20)))

    # Fold conv1 bias + eval-mode BatchNorm into the band matrices / bias.
    sc = params['bn_g'][0] / jnp.sqrt(params['bn_rv'][0] + eps)
    sh = params['bn_b'][0] - params['bn_rm'][0] * sc
    wa = _band_matrix(params['w1'][0, 0, :, 0], T, 3) * sc         # (T, T) avg channel (+BN)
    wm = _band_matrix(params['w1'][0, 1, :, 0], T, 3) * sc         # (T, T) max channel (+BN)
    w2 = _band_matrix(params['w2'][0, 0, :, 0], T, 4)              # (T, T) conv2
    b1f = jnp.reshape(params['b1'][0] * sc + sh, (1, 1)).astype(jnp.float32)
    b2f = jnp.reshape(params['b2'][0], (1, 1)).astype(jnp.float32)

    return pl.pallas_call(
        functools.partial(_frame_att_kernel, b, 1.0 / float(CV)),
        out_shape=jax.ShapeDtypeStruct((N, C, T, V), x.dtype),
        grid=(N // b,),
        in_specs=[
            pl.BlockSpec((b, C, T, V), lambda n: (n, 0, 0, 0)),    # x, native layout
            pl.BlockSpec((T, T), lambda n: (0, 0)),                # conv1 avg (+BN)
            pl.BlockSpec((T, T), lambda n: (0, 0)),                # conv1 max (+BN)
            pl.BlockSpec((1, 1), lambda n: (0, 0)),                # folded conv1/BN bias
            pl.BlockSpec((T, T), lambda n: (0, 0)),                # conv2
            pl.BlockSpec((1, 1), lambda n: (0, 0)),                # conv2 bias
        ],
        out_specs=pl.BlockSpec((b, C, T, V), lambda n: (n, 0, 0, 0)),
        compiler_params=pltpu.CompilerParams(
            dimension_semantics=("parallel",),
            vmem_limit_bytes=vmem_limit),
    )(x, wa, wm, b1f, w2, b2f)


def frame_att_reference(x, params, *, eps=1e-5):
    """Pure-JAX reference mirroring the PyTorch forward (eval-mode BatchNorm)."""
    N, C, T, V = x.shape
    xt = jnp.transpose(x, (0, 2, 1, 3))                   # (N, T, C, V)
    avg = xt.mean(axis=(2, 3))                            # (N, T)
    mx = xt.max(axis=(2, 3))                              # (N, T)
    feat = jnp.stack([avg, mx], axis=1)                   # (N, 2, T)

    w1 = params['w1'][:, :, :, 0]                         # (1, 2, 7)
    y = lax.conv_general_dilated(feat, w1, window_strides=(1,), padding=[(3, 3)],
                                 dimension_numbers=('NCH', 'OIH', 'NCH'))
    y = y + params['b1'][None, :, None]
    y = (y - params['bn_rm'][None, :, None]) \
        / jnp.sqrt(params['bn_rv'][None, :, None] + eps) \
        * params['bn_g'][None, :, None] + params['bn_b'][None, :, None]
    y = jnp.maximum(y, 0.0)

    w2 = params['w2'][:, :, :, 0]                         # (1, 1, 9)
    z = lax.conv_general_dilated(y, w2, window_strides=(1,), padding=[(4, 4)],
                                 dimension_numbers=('NCH', 'OIH', 'NCH'))
    z = z + params['b2'][None, :, None]                   # (N, 1, T)

    att = jax.nn.softmax(z, axis=1)[:, 0, :]              # softmax over size-1 dim
    return x * att[:, None, :, None] + x


if __name__ == "__main__":
    # Small shapes; V=8 deliberately not lane-aligned to exercise masked lanes.
    N, C, T, V = 2, 16, 16, 8

    ks = jax.random.split(jax.random.PRNGKey(0), 9)
    params = dict(
        w1=0.3 * jax.random.normal(ks[0], (1, 2, 7, 1), jnp.float32),
        b1=0.1 * jax.random.normal(ks[1], (1,), jnp.float32),
        bn_g=1.0 + 0.1 * jax.random.normal(ks[2], (1,), jnp.float32),
        bn_b=0.1 * jax.random.normal(ks[3], (1,), jnp.float32),
        bn_rm=0.05 * jax.random.normal(ks[4], (1,), jnp.float32),
        bn_rv=1.0 + 0.1 * jax.random.uniform(ks[5], (1,), jnp.float32),
        w2=0.3 * jax.random.normal(ks[6], (1, 1, 9, 1), jnp.float32),
        b2=0.1 * jax.random.normal(ks[7], (1,), jnp.float32),
    )
    x = jax.random.normal(ks[8], (N, C, T, V), jnp.float32)

    out = frame_att_pallas(x, params)
    out = jax.block_until_ready(out)

    ref = frame_att_reference(x, params)
    assert out.shape == (N, C, T, V)
    np.testing.assert_allclose(np.asarray(out), np.asarray(ref), atol=1e-4, rtol=1e-4)

    print("KERNEL_OK")
</pallas_src>

<mosaic_0001>
module attributes {stable_mosaic.version = 11 : i64} {
  func.func @_frame_att_kernel(%arg0: i32, %arg1: memref<1x16x16x8xf32, #tpu.memory_space<vmem>>, %arg2: memref<16x16xf32, #tpu.memory_space<vmem>>, %arg3: memref<16x16xf32, #tpu.memory_space<vmem>>, %arg4: memref<1x1xf32, #tpu.memory_space<vmem>>, %arg5: memref<16x16xf32, #tpu.memory_space<vmem>>, %arg6: memref<1x1xf32, #tpu.memory_space<vmem>>, %arg7: memref<1x16x16x8xf32, #tpu.memory_space<vmem>>) attributes {dimension_semantics = [#tpu.dimension_semantics<parallel>], iteration_bounds = array<i64: 2>, scalar_prefetch = 0 : i64, scratch_operands = 0 : i64, tpu.core_type = #tpu.core_type<tc>, window_params = [{transform_indices = @transform_0, window_bounds = array<i64: 1, 16, 16, 8>}, {pipeline_mode = #tpu.pipeline_mode<synchronous>, transform_indices = @transform_1, window_bounds = array<i64: 16, 16>}, {pipeline_mode = #tpu.pipeline_mode<synchronous>, transform_indices = @transform_2, window_bounds = array<i64: 16, 16>}, {pipeline_mode = #tpu.pipeline_mode<synchronous>, transform_indices = @transform_3, window_bounds = array<i64: 1, 1>}, {pipeline_mode = #tpu.pipeline_mode<synchronous>, transform_indices = @transform_4, window_bounds = array<i64: 16, 16>}, {pipeline_mode = #tpu.pipeline_mode<synchronous>, transform_indices = @transform_5, window_bounds = array<i64: 1, 1>}, {transform_indices = @transform_6, window_bounds = array<i64: 1, 16, 16, 8>}]} {
    %c0 = arith.constant 0 : index
    %c0_0 = arith.constant 0 : index
    %c0_1 = arith.constant 0 : index
    %c0_2 = arith.constant 0 : index
    %0 = vector.load %arg1[%c0, %c0_0, %c0_1, %c0_2] : memref<1x16x16x8xf32, #tpu.memory_space<vmem>>, vector<1x16x16x8xf32>
    %1 = vector.shape_cast %0 : vector<1x16x16x8xf32> to vector<16x16x8xf32>
    %cst = arith.constant dense<0.000000e+00> : vector<16x16xf32>
    %2 = vector.multi_reduction <add>, %1, %cst [2] : vector<16x16x8xf32> to vector<16x16xf32>
    %3 = vector.shape_cast %2 : vector<16x16xf32> to vector<16x16x1xf32>
    %4 = vector.extract_strided_slice %3 {offsets = [0, 0, 0], sizes = [8, 16, 1], strides = [1, 1, 1]} : vector<16x16x1xf32> to vector<8x16x1xf32>
    %5 = vector.extract_strided_slice %3 {offsets = [8, 0, 0], sizes = [8, 16, 1], strides = [1, 1, 1]} : vector<16x16x1xf32> to vector<8x16x1xf32>
    %6 = arith.addf %4, %5 : vector<8x16x1xf32>
    %7 = vector.extract_strided_slice %6 {offsets = [0, 0, 0], sizes = [4, 16, 1], strides = [1, 1, 1]} : vector<8x16x1xf32> to vector<4x16x1xf32>
    %8 = vector.extract_strided_slice %6 {offsets = [4, 0, 0], sizes = [4, 16, 1], strides = [1, 1, 1]} : vector<8x16x1xf32> to vector<4x16x1xf32>
    %9 = arith.addf %7, %8 : vector<4x16x1xf32>
    %10 = vector.extract_strided_slice %9 {offsets = [0, 0, 0], sizes = [2, 16, 1], strides = [1, 1, 1]} : vector<4x16x1xf32> to vector<2x16x1xf32>
    %11 = vector.extract_strided_slice %9 {offsets = [2, 0, 0], sizes = [2, 16, 1], strides = [1, 1, 1]} : vector<4x16x1xf32> to vector<2x16x1xf32>
    %12 = arith.addf %10, %11 : vector<2x16x1xf32>
    %13 = vector.extract_strided_slice %12 {offsets = [0, 0, 0], sizes = [1, 16, 1], strides = [1, 1, 1]} : vector<2x16x1xf32> to vector<1x16x1xf32>
    %14 = vector.extract_strided_slice %12 {offsets = [1, 0, 0], sizes = [1, 16, 1], strides = [1, 1, 1]} : vector<2x16x1xf32> to vector<1x16x1xf32>
    %15 = arith.addf %13, %14 : vector<1x16x1xf32>
    %16 = vector.shape_cast %15 : vector<1x16x1xf32> to vector<16x1xf32>
    %cst_3 = arith.constant 7.812500e-03 : f32
    %17 = vector.broadcast %cst_3 : f32 to vector<16x1xf32>
    %18 = arith.mulf %16, %17 : vector<16x1xf32>
    %cst_4 = arith.constant dense<0xFF800000> : vector<16x16xf32>
    %19 = vector.multi_reduction <maximumf>, %1, %cst_4 [2] : vector<16x16x8xf32> to vector<16x16xf32>
    %20 = vector.shape_cast %19 : vector<16x16xf32> to vector<16x16x1xf32>
    %21 = vector.extract_strided_slice %20 {offsets = [0, 0, 0], sizes = [8, 16, 1], strides = [1, 1, 1]} : vector<16x16x1xf32> to vector<8x16x1xf32>
    %22 = vector.extract_strided_slice %20 {offsets = [8, 0, 0], sizes = [8, 16, 1], strides = [1, 1, 1]} : vector<16x16x1xf32> to vector<8x16x1xf32>
    %23 = arith.maximumf %21, %22 : vector<8x16x1xf32>
    %24 = vector.extract_strided_slice %23 {offsets = [0, 0, 0], sizes = [4, 16, 1], strides = [1, 1, 1]} : vector<8x16x1xf32> to vector<4x16x1xf32>
    %25 = vector.extract_strided_slice %23 {offsets = [4, 0, 0], sizes = [4, 16, 1], strides = [1, 1, 1]} : vector<8x16x1xf32> to vector<4x16x1xf32>
    %26 = arith.maximumf %24, %25 : vector<4x16x1xf32>
    %27 = vector.extract_strided_slice %26 {offsets = [0, 0, 0], sizes = [2, 16, 1], strides = [1, 1, 1]} : vector<4x16x1xf32> to vector<2x16x1xf32>
    %28 = vector.extract_strided_slice %26 {offsets = [2, 0, 0], sizes = [2, 16, 1], strides = [1, 1, 1]} : vector<4x16x1xf32> to vector<2x16x1xf32>
    %29 = arith.maximumf %27, %28 : vector<2x16x1xf32>
    %30 = vector.extract_strided_slice %29 {offsets = [0, 0, 0], sizes = [1, 16, 1], strides = [1, 1, 1]} : vector<2x16x1xf32> to vector<1x16x1xf32>
    %31 = vector.extract_strided_slice %29 {offsets = [1, 0, 0], sizes = [1, 16, 1], strides = [1, 1, 1]} : vector<2x16x1xf32> to vector<1x16x1xf32>
    %32 = arith.maximumf %30, %31 : vector<1x16x1xf32>
    %33 = vector.shape_cast %32 : vector<1x16x1xf32> to vector<16x1xf32>
    %c0_5 = arith.constant 0 : index
    %c0_6 = arith.constant 0 : index
    %34 = vector.load %arg2[%c0_5, %c0_6] : memref<16x16xf32, #tpu.memory_space<vmem>>, vector<16x16xf32>
    %cst_7 = arith.constant dense<0.000000e+00> : vector<16x1xf32>
    %35 = tpu.matmul %34, %18, %cst_7 {dimension_numbers = #tpu.dot_dimension_numbers<[1], [0], [0], [1], [0, 0, 1, 1], [], []>} : vector<16x16xf32>, vector<16x1xf32>, vector<16x1xf32> -> vector<16x1xf32>
    %c0_8 = arith.constant 0 : index
    %c0_9 = arith.constant 0 : index
    %36 = vector.load %arg3[%c0_8, %c0_9] : memref<16x16xf32, #tpu.memory_space<vmem>>, vector<16x16xf32>
    %cst_10 = arith.constant dense<0.000000e+00> : vector<16x1xf32>
    %37 = tpu.matmul %36, %33, %cst_10 {dimension_numbers = #tpu.dot_dimension_numbers<[1], [0], [0], [1], [0, 0, 1, 1], [], []>} : vector<16x16xf32>, vector<16x1xf32>, vector<16x1xf32> -> vector<16x1xf32>
    %38 = arith.addf %35, %37 : vector<16x1xf32>
    %c0_11 = arith.constant 0 : index
    %c0_12 = arith.constant 0 : index
    %39 = vector.load %arg4[%c0_11, %c0_12] : memref<1x1xf32, #tpu.memory_space<vmem>>, vector<1x1xf32>
    %40 = vector.broadcast %39 : vector<1x1xf32> to vector<16x1xf32>
    %41 = arith.addf %38, %40 : vector<16x1xf32>
    %cst_13 = arith.constant 0.000000e+00 : f32
    %42 = vector.broadcast %cst_13 : f32 to vector<16x1xf32>
    %43 = arith.maximumf %41, %42 : vector<16x1xf32>
    %c0_14 = arith.constant 0 : index
    %c0_15 = arith.constant 0 : index
    %44 = vector.load %arg5[%c0_14, %c0_15] : memref<16x16xf32, #tpu.memory_space<vmem>>, vector<16x16xf32>
    %cst_16 = arith.constant dense<0.000000e+00> : vector<16x1xf32>
    %45 = tpu.matmul %44, %43, %cst_16 {dimension_numbers = #tpu.dot_dimension_numbers<[1], [0], [0], [1], [0, 0, 1, 1], [], []>} : vector<16x16xf32>, vector<16x1xf32>, vector<16x1xf32> -> vector<16x1xf32>
    %c0_17 = arith.constant 0 : index
    %c0_18 = arith.constant 0 : index
    %46 = vector.load %arg6[%c0_17, %c0_18] : memref<1x1xf32, #tpu.memory_space<vmem>>, vector<1x1xf32>
    %47 = vector.broadcast %46 : vector<1x1xf32> to vector<16x1xf32>
    %48 = arith.addf %45, %47 : vector<16x1xf32>
    %49 = arith.subf %48, %48 : vector<16x1xf32>
    %50 = math.exp %49 : vector<16x1xf32>
    %cst_19 = arith.constant 1.000000e+00 : f32
    %51 = vector.broadcast %cst_19 : f32 to vector<16x1xf32>
    %52 = arith.addf %50, %51 : vector<16x1xf32>
    %53 = vector.shape_cast %52 : vector<16x1xf32> to vector<1x16x1xf32>
    %54 = vector.broadcast %53 : vector<1x16x1xf32> to vector<16x16x8xf32>
    %55 = arith.mulf %1, %54 : vector<16x16x8xf32>
    %c0_20 = arith.constant 0 : index
    %c0_21 = arith.constant 0 : index
    %c0_22 = arith.constant 0 : index
    %c0_23 = arith.constant 0 : index
    %56 = vector.load %arg7[%c0_20, %c0_21, %c0_22, %c0_23] : memref<1x16x16x8xf32, #tpu.memory_space<vmem>>, vector<1x16x16x8xf32>
    %57 = vector.shape_cast %56 : vector<1x16x16x8xf32> to vector<16x16x8xf32>
    %58 = vector.shape_cast %55 : vector<16x16x8xf32> to vector<1x16x16x8xf32>
    tpu.vector_store %arg7[%c0_20, %c0_21, %c0_22, %c0_23], %58 {strides = array<i32>} : memref<1x16x16x8xf32, #tpu.memory_space<vmem>>, vector<1x16x16x8xf32>,
    return
  }
  func.func @transform_0(%arg0: i32) -> (i32, i32, i32, i32) {
    %c0_i32 = arith.constant 0 : i32
    %c0_i32_0 = arith.constant 0 : i32
    %c0_i32_1 = arith.constant 0 : i32
    %c0_i32_2 = arith.constant 0 : i32
    return %arg0, %c0_i32, %c0_i32_0, %c0_i32_1 : i32, i32, i32, i32
  }
  func.func @transform_1(%arg0: i32) -> (i32, i32) {
    %c0_i32 = arith.constant 0 : i32
    %c0_i32_0 = arith.constant 0 : i32
    %c0_i32_1 = arith.constant 0 : i32
    return %c0_i32, %c0_i32_0 : i32, i32
  }
  func.func @transform_2(%arg0: i32) -> (i32, i32) {
    %c0_i32 = arith.constant 0 : i32
    %c0_i32_0 = arith.constant 0 : i32
    %c0_i32_1 = arith.constant 0 : i32
    return %c0_i32, %c0_i32_0 : i32, i32
  }
  func.func @transform_3(%arg0: i32) -> (i32, i32) {
    %c0_i32 = arith.constant 0 : i32
    %c0_i32_0 = arith.constant 0 : i32
    %c0_i32_1 = arith.constant 0 : i32
    return %c0_i32, %c0_i32_0 : i32, i32
  }
  func.func @transform_4(%arg0: i32) -> (i32, i32) {
    %c0_i32 = arith.constant 0 : i32
    %c0_i32_0 = arith.constant 0 : i32
    %c0_i32_1 = arith.constant 0 : i32
    return %c0_i32, %c0_i32_0 : i32, i32
  }
  func.func @transform_5(%arg0: i32) -> (i32, i32) {
    %c0_i32 = arith.constant 0 : i32
    %c0_i32_0 = arith.constant 0 : i32
    %c0_i32_1 = arith.constant 0 : i32
    return %c0_i32, %c0_i32_0 : i32, i32
  }
  func.func @transform_6(%arg0: i32) -> (i32, i32, i32, i32) {
    %c0_i32 = arith.constant 0 : i32
    %c0_i32_0 = arith.constant 0 : i32
    %c0_i32_1 = arith.constant 0 : i32
    %c0_i32_2 = arith.constant 0 : i32
    return %arg0, %c0_i32, %c0_i32_0, %c0_i32_1 : i32, i32, i32, i32
  }
}

</mosaic_0001>

<llo_original>
// kernel: tpu_custom_call.1
$region0: #{tpu_custom_call.1}
  #allocation0 [shape = 'u32[]', space=smem, size = 0x4, offset = 0x4, fixed_abs, tag = 'smem constant byte address 0x4 - core index']
  #allocation1 [shape = 'u32[144,128]{1,0:T(1,128)}', space=vmem, size = 0x12000, scoped, tag = 'internal scratch']
  #allocation2 [shape = 'f32[1,1]{1,0:T(1,128)S(1)}', space=vmem, size = 0x200, scoped, tag = 'scoped memory for tpu_custom_call.1']
  #allocation3 [shape = 'f32[1,1]{1,0:T(1,128)S(1)}', space=vmem, size = 0x200, scoped, tag = 'scoped memory for tpu_custom_call.1']
  %s0 = inlined_call_operand.vmem [shape: f32[2,16,16,8], index: 0, kind: input, shape index: {}]
  %s1 = inlined_call_operand.vmem [shape: f32[16,16], index: 1, kind: input, shape index: {}]
  %s2 = inlined_call_operand.vmem [shape: f32[16,16], index: 2, kind: input, shape index: {}]
  %s3 = inlined_call_operand.<no memory space> [shape: f32[1,1], index: 3, kind: input, shape index: {}]
  %s4 = inlined_call_operand.vmem [shape: f32[16,16], index: 4, kind: input, shape index: {}]
  %s5 = inlined_call_operand.<no memory space> [shape: f32[1,1], index: 5, kind: input, shape index: {}]
  %s6 = inlined_call_operand.vmem [shape: f32[2,16,16,8], index: 6, kind: output, shape index: {}]
  %s7 = sld [smem:[#allocation0]]
  $region57: #{tpu_custom_call.1} parent=0
    _
  %s9 = ssub.s32 1, %s7
  %s10 = scalar_select 0, %s9, %s7
  %v11 = vstv %s3
  %12 = vst [vmem:[#allocation2] sm:$0x1] %v11
  %v13 = vstv %s5
  %14 = vst [vmem:[#allocation3] sm:$0x1] %v13
  loop: start=0, step=1, limit=4
  $region2: #{tpu_custom_call.1} parent=0 // loop_pre_header
    _
  $region3: #{tpu_custom_call.1} parent=0 // loop_header
    %s16 = sphi 0, %s20
    %p17 = scmp.ge.s32.totalorder %s16, 4
    %s26 = sphi 0, %s28
    %s29 = sphi 0, %s26
    %s30 = sphi 0, %s29
    %s46 = sphi 0, %s30
    %s50 = sphi 0, %s50
    %s52 = sphi 0, %s50
    %s53 = sphi 0, %s52
    %s67 = sphi 0, %s53
    %s71 = sphi 0, %s71
    %s73 = sphi 0, %s71
    %s74 = sphi 0, %s73
    %s88 = sphi 0, %s74
    %s92 = sphi 0, %s92
    %s94 = sphi 0, %s92
    %s95 = sphi 0, %s94
    %s109 = sphi 0, %s95
    %s113 = sphi 0, %s113
    %s115 = sphi 0, %s113
    %s116 = sphi 0, %s115
    %s130 = sphi 0, %s116
    %s134 = sphi 0, %s134
    %s136 = sphi 0, %s134
    %s137 = sphi 0, %s136
    %s151 = sphi 0, %s137
    %s157 = sphi 0, %s159
    %s160 = sphi 0, %s157
    %s161 = sphi 0, %s160
    %s177 = sphi 0, %s161
  $region4: #{tpu_custom_call.1} parent=0 // loop_header_branch
    %19 = sbr.rel (%p17) target = $region8
  $region5: #{tpu_custom_call.1} parent=0 // loop_body
    %s21 = ssub.s32 %s16, 1
    %s22 = ssub.s32 %s16, 2
    %s23 = sadd.s32 %s16, 1
    %s24 = ssub.s32 %s16, %s23
    %p25 = scmp.eq.s32.totalorder %s24, 0
    %s27 = sadd.s32 %s26, 1
    %s28 = scalar_select %p25, %s26, %s27
    %p31 = pneg %p25
    %p32 = scmp.eq.s32.totalorder %s16, 1
    %p33 = por %p31, %p32
    %p34 = scmp.ne.s32.totalorder %s26, %s29
    %p35 = scmp.eq.s32.totalorder %s16, 0
    %p36 = por %p34, %p35
    %p37 = scmp.ne.s32.totalorder %s26, %s29
    %p38 = scmp.eq.s32.totalorder %s21, 1
    %p39 = por %p37, %p38
    %p40 = scmp.ne.s32.totalorder %s29, %s30
    %p41 = scmp.eq.s32.totalorder %s21, 0
    %p42 = por %p40, %p41
    %p43 = scmp.ne.s32.totalorder %s29, %s30
    %p44 = scmp.eq.s32.totalorder %s22, 1
    %p45 = por %p43, %p44
    %p47 = scmp.ne.s32.totalorder %s30, %s46
    %p48 = scmp.eq.s32.totalorder %s22, 0
    %p49 = por %p47, %p48
    %s51 = sadd.s32 %s50, 1
    %p54 = scmp.eq.s32.totalorder %s16, 1
    %p55 = scmp.ne.s32.totalorder %s50, %s52
    %p56 = scmp.eq.s32.totalorder %s16, 0
    %p57 = por %p55, %p56
    %p58 = scmp.ne.s32.totalorder %s50, %s52
    %p59 = scmp.eq.s32.totalorder %s21, 1
    %p60 = por %p58, %p59
    %p61 = scmp.ne.s32.totalorder %s52, %s53
    %p62 = scmp.eq.s32.totalorder %s21, 0
    %p63 = por %p61, %p62
    %p64 = scmp.ne.s32.totalorder %s52, %s53
    %p65 = scmp.eq.s32.totalorder %s22, 1
    %p66 = por %p64, %p65
    %p68 = scmp.ne.s32.totalorder %s53, %s67
    %p69 = scmp.eq.s32.totalorder %s22, 0
    %p70 = por %p68, %p69
    %s72 = sadd.s32 %s71, 1
    %p75 = scmp.eq.s32.totalorder %s16, 1
    %p76 = scmp.ne.s32.totalorder %s71, %s73
    %p77 = scmp.eq.s32.totalorder %s16, 0
    %p78 = por %p76, %p77
    %p79 = scmp.ne.s32.totalorder %s71, %s73
    %p80 = scmp.eq.s32.totalorder %s21, 1
    %p81 = por %p79, %p80
    %p82 = scmp.ne.s32.totalorder %s73, %s74
    %p83 = scmp.eq.s32.totalorder %s21, 0
    %p84 = por %p82, %p83
    %p85 = scmp.ne.s32.totalorder %s73, %s74
    %p86 = scmp.eq.s32.totalorder %s22, 1
    %p87 = por %p85, %p86
    %p89 = scmp.ne.s32.totalorder %s74, %s88
    %p90 = scmp.eq.s32.totalorder %s22, 0
    %p91 = por %p89, %p90
    %s93 = sadd.s32 %s92, 1
    %p96 = scmp.eq.s32.totalorder %s16, 1
    %p97 = scmp.ne.s32.totalorder %s92, %s94
    %p98 = scmp.eq.s32.totalorder %s16, 0
    %p99 = por %p97, %p98
    %p100 = scmp.ne.s32.totalorder %s92, %s94
    %p101 = scmp.eq.s32.totalorder %s21, 1
    %p102 = por %p100, %p101
    %p103 = scmp.ne.s32.totalorder %s94, %s95
    %p104 = scmp.eq.s32.totalorder %s21, 0
    %p105 = por %p103, %p104
    %p106 = scmp.ne.s32.totalorder %s94, %s95
    %p107 = scmp.eq.s32.totalorder %s22, 1
    %p108 = por %p106, %p107
    %p110 = scmp.ne.s32.totalorder %s95, %s109
    %p111 = scmp.eq.s32.totalorder %s22, 0
    %p112 = por %p110, %p111
    %s114 = sadd.s32 %s113, 1
    %p117 = scmp.eq.s32.totalorder %s16, 1
    %p118 = scmp.ne.s32.totalorder %s113, %s115
    %p119 = scmp.eq.s32.totalorder %s16, 0
    %p120 = por %p118, %p119
    %p121 = scmp.ne.s32.totalorder %s113, %s115
    %p122 = scmp.eq.s32.totalorder %s21, 1
    %p123 = por %p121, %p122
    %p124 = scmp.ne.s32.totalorder %s115, %s116
    %p125 = scmp.eq.s32.totalorder %s21, 0
    %p126 = por %p124, %p125
    %p127 = scmp.ne.s32.totalorder %s115, %s116
    %p128 = scmp.eq.s32.totalorder %s22, 1
    %p129 = por %p127, %p128
    %p131 = scmp.ne.s32.totalorder %s116, %s130
    %p132 = scmp.eq.s32.totalorder %s22, 0
    %p133 = por %p131, %p132
    %s135 = sadd.s32 %s134, 1
    %p138 = scmp.eq.s32.totalorder %s16, 1
    %p139 = scmp.ne.s32.totalorder %s134, %s136
    %p140 = scmp.eq.s32.totalorder %s16, 0
    %p141 = por %p139, %p140
    %p142 = scmp.ne.s32.totalorder %s134, %s136
    %p143 = scmp.eq.s32.totalorder %s21, 1
    %p144 = por %p142, %p143
    %p145 = scmp.ne.s32.totalorder %s136, %s137
    %p146 = scmp.eq.s32.totalorder %s21, 0
    %p147 = por %p145, %p146
    %p148 = scmp.ne.s32.totalorder %s136, %s137
    %p149 = scmp.eq.s32.totalorder %s22, 1
    %p150 = por %p148, %p149
    %p152 = scmp.ne.s32.totalorder %s137, %s151
    %p153 = scmp.eq.s32.totalorder %s22, 0
    %p154 = por %p152, %p153
    %s155 = ssub.s32 %s16, %s23
    %p156 = scmp.eq.s32.totalorder %s155, 0
    %s158 = sadd.s32 %s157, 1
    %s159 = scalar_select %p156, %s157, %s158
    %p162 = pneg %p156
    %p163 = scmp.eq.s32.totalorder %s16, 1
    %p164 = por %p162, %p163
    %p165 = scmp.ne.s32.totalorder %s157, %s160
    %p166 = scmp.eq.s32.totalorder %s16, 0
    %p167 = por %p165, %p166
    %p168 = scmp.ne.s32.totalorder %s157, %s160
    %p169 = scmp.eq.s32.totalorder %s21, 1
    %p170 = por %p168, %p169
    %p171 = scmp.ne.s32.totalorder %s160, %s161
    %p172 = scmp.eq.s32.totalorder %s21, 0
    %p173 = por %p171, %p172
    %p174 = scmp.ne.s32.totalorder %s160, %s161
    %p175 = scmp.eq.s32.totalorder %s22, 1
    %p176 = por %p174, %p175
    %p178 = scmp.ne.s32.totalorder %s161, %s177
    %p179 = scmp.eq.s32.totalorder %s22, 0
    %p180 = por %p178, %p179
    %p181 = scmp.le.s32.totalorder 1, %s16
    %p182 = scmp.lt.s32.totalorder %s16, 3
    %p183 = pnand %p181, %p182
    %p184 = pneg %p183
    // Predicated region
    $region9: #{tpu_custom_call.1} parent=5 // pred_check
      _
    $region10: #{tpu_custom_call.1} parent=5 // pred_check_branch
      %186 = sbr.rel (%p183) target = $region12
    $region11: #{tpu_custom_call.1} parent=5 // pred_region
      %s187 = ssub.s32 %s16, 1
      // Predicated region
      $region13: #{tpu_custom_call.1} parent=11 // pred_check
        %p188 = pneg %p63
      $region14: #{tpu_custom_call.1} parent=11 // pred_check_branch
        %190 = sbr.rel (%p188) target = $region16
      $region15: #{tpu_custom_call.1} parent=11 // pred_region
        _
      $region16: #{tpu_custom_call.1} parent=11 // pred_fallthru
        _
      // Predicated region
      $region17: #{tpu_custom_call.1} parent=11 // pred_check
        %p191 = pneg %p84
      $region18: #{tpu_custom_call.1} parent=11 // pred_check_branch
        %193 = sbr.rel (%p191) target = $region20
      $region19: #{tpu_custom_call.1} parent=11 // pred_region
        _
      $region20: #{tpu_custom_call.1} parent=11 // pred_fallthru
        _
      // Predicated region
      $region21: #{tpu_custom_call.1} parent=11 // pred_check
        %p194 = pneg %p105
      $region22: #{tpu_custom_call.1} parent=11 // pred_check_branch
        %196 = sbr.rel (%p194) target = $region24
      $region23: #{tpu_custom_call.1} parent=11 // pred_region
        _
      $region24: #{tpu_custom_call.1} parent=11 // pred_fallthru
        _
      // Predicated region
      $region25: #{tpu_custom_call.1} parent=11 // pred_check
        %p197 = pneg %p126
      $region26: #{tpu_custom_call.1} parent=11 // pred_check_branch
        %199 = sbr.rel (%p197) target = $region28
      $region27: #{tpu_custom_call.1} parent=11 // pred_region
        _
      $region28: #{tpu_custom_call.1} parent=11 // pred_fallthru
        _
      // Predicated region
      $region29: #{tpu_custom_call.1} parent=11 // pred_check
        %p200 = pneg %p147
      $region30: #{tpu_custom_call.1} parent=11 // pred_check_branch
        %202 = sbr.rel (%p200) target = $region32
      $region31: #{tpu_custom_call.1} parent=11 // pred_region
        _
      $region32: #{tpu_custom_call.1} parent=11 // pred_fallthru
        _
    $region12: #{tpu_custom_call.1} parent=5 // pred_fallthru
      _
    %p203 = scmp.lt.s32.totalorder %s16, 2
    // Predicated region
    $region33: #{tpu_custom_call.1} parent=5 // pred_check
      %p204 = pneg %p203
    $region34: #{tpu_custom_call.1} parent=5 // pred_check_branch
      %206 = sbr.rel (%p204) target = $region36
    $region35: #{tpu_custom_call.1} parent=5 // pred_region
      // Predicated region
      $region37: #{tpu_custom_call.1} parent=35 // pred_check
        %p207 = pneg %p36
      $region38: #{tpu_custom_call.1} parent=35 // pred_check_branch
        %209 = sbr.rel (%p207) target = $region40
      $region39: #{tpu_custom_call.1} parent=35 // pred_region
        %p210 = scmp.lt.s32.totalorder %s16, 1
        %s211 = scalar_select %p210, %s16, 1
        %s212 = smul.addr %s211, 32
        %s213 = smul.addr %s212, 8
        %s214 = scalar_lea.vmem %s0, %s213
      $region40: #{tpu_custom_call.1} parent=35 // pred_fallthru
        _
    $region36: #{tpu_custom_call.1} parent=5 // pred_fallthru
      _
    %p215 = scmp.le.s32.totalorder 1, %s16
    %p216 = scmp.lt.s32.totalorder %s16, 3
    %p217 = pnand %p215, %p216
    %p218 = pneg %p217
    // Predicated region
    $region41: #{tpu_custom_call.1} parent=5 // pred_check
      _
    $region42: #{tpu_custom_call.1} parent=5 // pred_check_branch
      %220 = sbr.rel (%p217) target = $region44
    $region43: #{tpu_custom_call.1} parent=5 // pred_region
      %s221 = ssub.s32 %s16, 1
      %p222 = scmp.lt.s32.totalorder %s21, 1
      %s223 = scalar_select %p222, %s21, 1
      %s224 = smul.addr %s223, 32
      %s225 = smul.addr %s224, 8
      %s226 = scalar_lea.vmem %s0, %s225
      %p227 = pneg %p42
      %p228 = pneg %p39
      %p229 = pneg %p63
      %p230 = pneg %p60
      %p231 = pneg %p84
      %p232 = pneg %p81
      %p233 = pneg %p105
      %p234 = pneg %p102
      %p235 = pneg %p126
      %p236 = pneg %p123
      %p237 = pneg %p147
      %p238 = pneg %p144
      %p239 = pneg %p173
      %p240 = pneg %p170
      %p241 = scmp.lt.s32.totalorder %s21, 1
      %s242 = scalar_select %p241, %s21, 1
      %s243 = smul.addr %s242, 32
      %s244 = smul.addr %s243, 8
      %s245 = scalar_lea.vmem %s6, %s244
      %p246 = scmp.lt.s32.totalorder %s21, 1
      %s247 = scalar_select %p246, %s21, 1
      %s248 = smul.addr %s247, 32
      %s249 = smul.addr %s248, 8
      %s250 = scalar_lea.vmem %s0, %s249
      %p251 = scmp.lt.s32.totalorder %s21, 1
      %s252 = scalar_select %p251, %s21, 1
      %s253 = smul.addr %s252, 32
      %s254 = smul.addr %s253, 8
      %s255 = scalar_lea.vmem %s6, %s254
      %v256 = vld [vmem:[%s250] sm:$0xff]
      %v257 = vld [vmem:[%s250 + $0x8] sm:$0xff]
      %v258 = vld [vmem:[%s250 + $0x10] sm:$0xff]
      %v259 = vld [vmem:[%s250 + $0x18] sm:$0xff]
      %v260 = vld [vmem:[%s250 + $0x20] sm:$0xff]
      %v261 = vld [vmem:[%s250 + $0x28] sm:$0xff]
      %v262 = vld [vmem:[%s250 + $0x30] sm:$0xff]
      %v263 = vld [vmem:[%s250 + $0x38] sm:$0xff]
      %v264 = vld [vmem:[%s250 + $0x40] sm:$0xff]
      %v265 = vld [vmem:[%s250 + $0x48] sm:$0xff]
      %v266 = vld [vmem:[%s250 + $0x50] sm:$0xff]
      %v267 = vld [vmem:[%s250 + $0x58] sm:$0xff]
      %v268 = vld [vmem:[%s250 + $0x60] sm:$0xff]
      %v269 = vld [vmem:[%s250 + $0x68] sm:$0xff]
      %v270 = vld [vmem:[%s250 + $0x70] sm:$0xff]
      %v271 = vld [vmem:[%s250 + $0x78] sm:$0xff]
      %v272 = vld [vmem:[%s250 + $0x80] sm:$0xff]
      %v273 = vld [vmem:[%s250 + $0x88] sm:$0xff]
      %v274 = vld [vmem:[%s250 + $0x90] sm:$0xff]
      %v275 = vld [vmem:[%s250 + $0x98] sm:$0xff]
      %v276 = vld [vmem:[%s250 + $0xa0] sm:$0xff]
      %v277 = vld [vmem:[%s250 + $0xa8] sm:$0xff]
      %v278 = vld [vmem:[%s250 + $0xb0] sm:$0xff]
      %v279 = vld [vmem:[%s250 + $0xb8] sm:$0xff]
      %v280 = vld [vmem:[%s250 + $0xc0] sm:$0xff]
      %v281 = vld [vmem:[%s250 + $0xc8] sm:$0xff]
      %v282 = vld [vmem:[%s250 + $0xd0] sm:$0xff]
      %v283 = vld [vmem:[%s250 + $0xd8] sm:$0xff]
      %v284 = vld [vmem:[%s250 + $0xe0] sm:$0xff]
      %v285 = vld [vmem:[%s250 + $0xe8] sm:$0xff]
      %v286 = vld [vmem:[%s250 + $0xf0] sm:$0xff]
      %v287 = vld [vmem:[%s250 + $0xf8] sm:$0xff]
      %vm288 = vcmask 64512
      %v289 = vsel %vm288, %v256, 0.0
      %290 = vadd.xlane.f32.xlu0 %v289
      %v291 = vpop.xlane.xlu0 %290
      %v292 = vsel %vm288, %v257, 0.0
      %293 = vadd.xlane.f32.xlu0 %v292
      %v294 = vpop.xlane.xlu0 %293
      %v295 = vsel %vm288, %v258, 0.0
      %296 = vadd.xlane.f32.xlu0 %v295
      %v297 = vpop.xlane.xlu0 %296
      %v298 = vsel %vm288, %v259, 0.0
      %299 = vadd.xlane.f32.xlu0 %v298
      %v300 = vpop.xlane.xlu0 %299
      %v301 = vsel %vm288, %v260, 0.0
      %302 = vadd.xlane.f32.xlu0 %v301
      %v303 = vpop.xlane.xlu0 %302
      %v304 = vsel %vm288, %v261, 0.0
      %305 = vadd.xlane.f32.xlu0 %v304
      %v306 = vpop.xlane.xlu0 %305
      %v307 = vsel %vm288, %v262, 0.0
      %308 = vadd.xlane.f32.xlu0 %v307
      %v309 = vpop.xlane.xlu0 %308
      %v310 = vsel %vm288, %v263, 0.0
      %311 = vadd.xlane.f32.xlu0 %v310
      %v312 = vpop.xlane.xlu0 %311
      %v313 = vsel %vm288, %v264, 0.0
      %314 = vadd.xlane.f32.xlu0 %v313
      %v315 = vpop.xlane.xlu0 %314
      %v316 = vsel %vm288, %v265, 0.0
      %317 = vadd.xlane.f32.xlu0 %v316
      %v318 = vpop.xlane.xlu0 %317
      %v319 = vsel %vm288, %v266, 0.0
      %320 = vadd.xlane.f32.xlu0 %v319
      %v321 = vpop.xlane.xlu0 %320
      %v322 = vsel %vm288, %v267, 0.0
      %323 = vadd.xlane.f32.xlu0 %v322
      %v324 = vpop.xlane.xlu0 %323
      %v325 = vsel %vm288, %v268, 0.0
      %326 = vadd.xlane.f32.xlu0 %v325
      %v327 = vpop.xlane.xlu0 %326
      %v328 = vsel %vm288, %v269, 0.0
      %329 = vadd.xlane.f32.xlu0 %v328
      %v330 = vpop.xlane.xlu0 %329
      %v331 = vsel %vm288, %v270, 0.0
      %332 = vadd.xlane.f32.xlu0 %v331
      %v333 = vpop.xlane.xlu0 %332
      %v334 = vsel %vm288, %v271, 0.0
      %335 = vadd.xlane.f32.xlu0 %v334
      %v336 = vpop.xlane.xlu0 %335
      %v337 = vsel %vm288, %v272, 0.0
      %338 = vadd.xlane.f32.xlu0 %v337
      %v339 = vpop.xlane.xlu0 %338
      %v340 = vsel %vm288, %v273, 0.0
      %341 = vadd.xlane.f32.xlu0 %v340
      %v342 = vpop.xlane.xlu0 %341
      %v343 = vsel %vm288, %v274, 0.0
      %344 = vadd.xlane.f32.xlu0 %v343
      %v345 = vpop.xlane.xlu0 %344
      %v346 = vsel %vm288, %v275, 0.0
      %347 = vadd.xlane.f32.xlu0 %v346
      %v348 = vpop.xlane.xlu0 %347
      %v349 = vsel %vm288, %v276, 0.0
      %350 = vadd.xlane.f32.xlu0 %v349
      %v351 = vpop.xlane.xlu0 %350
      %v352 = vsel %vm288, %v277, 0.0
      %353 = vadd.xlane.f32.xlu0 %v352
      %v354 = vpop.xlane.xlu0 %353
      %v355 = vsel %vm288, %v278, 0.0
      %356 = vadd.xlane.f32.xlu0 %v355
      %v357 = vpop.xlane.xlu0 %356
      %v358 = vsel %vm288, %v279, 0.0
      %359 = vadd.xlane.f32.xlu0 %v358
      %v360 = vpop.xlane.xlu0 %359
      %v361 = vsel %vm288, %v280, 0.0
      %362 = vadd.xlane.f32.xlu0 %v361
      %v363 = vpop.xlane.xlu0 %362
      %v364 = vsel %vm288, %v281, 0.0
      %365 = vadd.xlane.f32.xlu0 %v364
      %v366 = vpop.xlane.xlu0 %365
      %v367 = vsel %vm288, %v282, 0.0
      %368 = vadd.xlane.f32.xlu0 %v367
      %v369 = vpop.xlane.xlu0 %368
      %v370 = vsel %vm288, %v283, 0.0
      %371 = vadd.xlane.f32.xlu0 %v370
      %v372 = vpop.xlane.xlu0 %371
      %v373 = vsel %vm288, %v284, 0.0
      %374 = vadd.xlane.f32.xlu0 %v373
      %v375 = vpop.xlane.xlu0 %374
      %v376 = vsel %vm288, %v285, 0.0
      %377 = vadd.xlane.f32.xlu0 %v376
      %v378 = vpop.xlane.xlu0 %377
      %v379 = vsel %vm288, %v286, 0.0
      %380 = vadd.xlane.f32.xlu0 %v379
      %v381 = vpop.xlane.xlu0 %380
      %v382 = vsel %vm288, %v287, 0.0
      %383 = vadd.xlane.f32.xlu0 %v382
      %v384 = vpop.xlane.xlu0 %383
      %v385 = vadd.f32 %v291, %v339
      %v386 = vadd.f32 %v294, %v342
      %v387 = vadd.f32 %v297, %v345
      %v388 = vadd.f32 %v300, %v348
      %v389 = vadd.f32 %v303, %v351
      %v390 = vadd.f32 %v306, %v354
      %v391 = vadd.f32 %v309, %v357
      %v392 = vadd.f32 %v312, %v360
      %v393 = vadd.f32 %v315, %v363
      %v394 = vadd.f32 %v318, %v366
      %v395 = vadd.f32 %v321, %v369
      %v396 = vadd.f32 %v324, %v372
      %v397 = vadd.f32 %v327, %v375
      %v398 = vadd.f32 %v330, %v378
      %v399 = vadd.f32 %v333, %v381
      %v400 = vadd.f32 %v336, %v384
      %v401 = vadd.f32 %v385, %v393
      %v402 = vadd.f32 %v386, %v394
      %v403 = vadd.f32 %v387, %v395
      %v404 = vadd.f32 %v388, %v396
      %v405 = vadd.f32 %v389, %v397
      %v406 = vadd.f32 %v390, %v398
      %v407 = vadd.f32 %v391, %v399
      %v408 = vadd.f32 %v392, %v400
      %v409 = vadd.f32 %v401, %v405
      %v410 = vadd.f32 %v402, %v406
      %v411 = vadd.f32 %v403, %v407
      %v412 = vadd.f32 %v404, %v408
      %v413 = vadd.f32 %v409, %v411
      %v414 = vadd.f32 %v410, %v412
      %v415 = vmul.f32 %v413, 0.0078125
      %v416 = vmul.f32 %v414, 0.0078125
      %v417 = vsel %vm288, %v256, -inf
      %418 = vmax.xlane.f32.xlu0 %v417
      %v419 = vpop.xlane.xlu0 %418
      %v420 = vsel %vm288, %v257, -inf
      %421 = vmax.xlane.f32.xlu0 %v420
      %v422 = vpop.xlane.xlu0 %421
      %v423 = vsel %vm288, %v258, -inf
      %424 = vmax.xlane.f32.xlu0 %v423
      %v425 = vpop.xlane.xlu0 %424
      %v426 = vsel %vm288, %v259, -inf
      %427 = vmax.xlane.f32.xlu0 %v426
      %v428 = vpop.xlane.xlu0 %427
      %v429 = vsel %vm288, %v260, -inf
      %430 = vmax.xlane.f32.xlu0 %v429
      %v431 = vpop.xlane.xlu0 %430
      %v432 = vsel %vm288, %v261, -inf
      %433 = vmax.xlane.f32.xlu0 %v432
      %v434 = vpop.xlane.xlu0 %433
      %v435 = vsel %vm288, %v262, -inf
      %436 = vmax.xlane.f32.xlu0 %v435
      %v437 = vpop.xlane.xlu0 %436
      %v438 = vsel %vm288, %v263, -inf
      %439 = vmax.xlane.f32.xlu0 %v438
      %v440 = vpop.xlane.xlu0 %439
      %v441 = vsel %vm288, %v264, -inf
      %442 = vmax.xlane.f32.xlu0 %v441
      %v443 = vpop.xlane.xlu0 %442
      %v444 = vsel %vm288, %v265, -inf
      %445 = vmax.xlane.f32.xlu0 %v444
      %v446 = vpop.xlane.xlu0 %445
      %v447 = vsel %vm288, %v266, -inf
      %448 = vmax.xlane.f32.xlu0 %v447
      %v449 = vpop.xlane.xlu0 %448
      %v450 = vsel %vm288, %v267, -inf
      %451 = vmax.xlane.f32.xlu0 %v450
      %v452 = vpop.xlane.xlu0 %451
      %v453 = vsel %vm288, %v268, -inf
      %454 = vmax.xlane.f32.xlu0 %v453
      %v455 = vpop.xlane.xlu0 %454
      %v456 = vsel %vm288, %v269, -inf
      %457 = vmax.xlane.f32.xlu0 %v456
      %v458 = vpop.xlane.xlu0 %457
      %v459 = vsel %vm288, %v270, -inf
      %460 = vmax.xlane.f32.xlu0 %v459
      %v461 = vpop.xlane.xlu0 %460
      %v462 = vsel %vm288, %v271, -inf
      %463 = vmax.xlane.f32.xlu0 %v462
      %v464 = vpop.xlane.xlu0 %463
      %v465 = vsel %vm288, %v272, -inf
      %466 = vmax.xlane.f32.xlu0 %v465
      %v467 = vpop.xlane.xlu0 %466
      %v468 = vsel %vm288, %v273, -inf
      %469 = vmax.xlane.f32.xlu0 %v468
      %v470 = vpop.xlane.xlu0 %469
      %v471 = vsel %vm288, %v274, -inf
      %472 = vmax.xlane.f32.xlu0 %v471
      %v473 = vpop.xlane.xlu0 %472
      %v474 = vsel %vm288, %v275, -inf
      %475 = vmax.xlane.f32.xlu0 %v474
      %v476 = vpop.xlane.xlu0 %475
      %v477 = vsel %vm288, %v276, -inf
      %478 = vmax.xlane.f32.xlu0 %v477
      %v479 = vpop.xlane.xlu0 %478
      %v480 = vsel %vm288, %v277, -inf
      %481 = vmax.xlane.f32.xlu0 %v480
      %v482 = vpop.xlane.xlu0 %481
      %v483 = vsel %vm288, %v278, -inf
      %484 = vmax.xlane.f32.xlu0 %v483
      %v485 = vpop.xlane.xlu0 %484
      %v486 = vsel %vm288, %v279, -inf
      %487 = vmax.xlane.f32.xlu0 %v486
      %v488 = vpop.xlane.xlu0 %487
      %v489 = vsel %vm288, %v280, -inf
      %490 = vmax.xlane.f32.xlu0 %v489
      %v491 = vpop.xlane.xlu0 %490
      %v492 = vsel %vm288, %v281, -inf
      %493 = vmax.xlane.f32.xlu0 %v492
      %v494 = vpop.xlane.xlu0 %493
      %v495 = vsel %vm288, %v282, -inf
      %496 = vmax.xlane.f32.xlu0 %v495
      %v497 = vpop.xlane.xlu0 %496
      %v498 = vsel %vm288, %v283, -inf
      %499 = vmax.xlane.f32.xlu0 %v498
      %v500 = vpop.xlane.xlu0 %499
      %v501 = vsel %vm288, %v284, -inf
      %502 = vmax.xlane.f32.xlu0 %v501
      %v503 = vpop.xlane.xlu0 %502
      %v504 = vsel %vm288, %v285, -inf
      %505 = vmax.xlane.f32.xlu0 %v504
      %v506 = vpop.xlane.xlu0 %505
      %v507 = vsel %vm288, %v286, -inf
      %508 = vmax.xlane.f32.xlu0 %v507
      %v509 = vpop.xlane.xlu0 %508
      %v510 = vsel %vm288, %v287, -inf
      %511 = vmax.xlane.f32.xlu0 %v510
      %v512 = vpop.xlane.xlu0 %511
      %v513 = vmax.f32 %v419, %v467
      %v514 = vmax.f32 %v422, %v470
      %v515 = vmax.f32 %v425, %v473
      %v516 = vmax.f32 %v428, %v476
      %v517 = vmax.f32 %v431, %v479
      %v518 = vmax.f32 %v434, %v482
      %v519 = vmax.f32 %v437, %v485
      %v520 = vmax.f32 %v440, %v488
      %v521 = vmax.f32 %v443, %v491
      %v522 = vmax.f32 %v446, %v494
      %v523 = vmax.f32 %v449, %v497
      %v524 = vmax.f32 %v452, %v500
      %v525 = vmax.f32 %v455, %v503
      %v526 = vmax.f32 %v458, %v506
      %v527 = vmax.f32 %v461, %v509
      %v528 = vmax.f32 %v464, %v512
      %v529 = vmax.f32 %v513, %v521
      %v530 = vmax.f32 %v514, %v522
      %v531 = vmax.f32 %v515, %v523
      %v532 = vmax.f32 %v516, %v524
      %v533 = vmax.f32 %v517, %v525
      %v534 = vmax.f32 %v518, %v526
      %v535 = vmax.f32 %v519, %v527
      %v536 = vmax.f32 %v520, %v528
      %v537 = vmax.f32 %v529, %v533
      %v538 = vmax.f32 %v530, %v534
      %v539 = vmax.f32 %v531, %v535
      %v540 = vmax.f32 %v532, %v536
      %v541 = vmax.f32 %v537, %v539
      %v542 = vmax.f32 %v538, %v540
      %v543 = vld [vmem:[%s1] sm:$0xff]
      %v544 = vld [vmem:[%s1 + $0x8] sm:$0xff]
      %v545 = vld [vmem:[%s2] sm:$0xff]
      %v546 = vld [vmem:[%s2 + $0x8] sm:$0xff]
      %vm547 = vcmask 130048
      %v549 = vsel %vm547, %v545, 0
      %v552 = vsel %vm547, %v546, 0
      %554 = vmatprep.subr.mxu0 0.0
      %555 = vmatpush1.msra.mxu0 %v541
      %556 = vmatprep.subr.mxu0 0.0
      %557 = vmatpush1.msra.mxu0 %v542
      %558 = vmatprep.subr.mxu0 0.0
      %559 = vmatpush1.msra.mxu0 0.0
      %560 = vmatprep.subr.mxu0 0.0
      %561 = vmatpush1.msra.mxu0 0.0
      %562 = vmatprep.subr.mxu0 0.0
      %563 = vmatpush1.msra.mxu0 0.0
      %564 = vmatprep.subr.mxu0 0.0
      %565 = vmatpush1.msra.mxu0 0.0
      %566 = vmatprep.subr.mxu0 0.0
      %567 = vmatpush1.msra.mxu0 0.0
      %568 = vmatprep.subr.mxu0 0.0
      %569 = vmatpush1.msra.mxu0 0.0
      %570 = vmatprep.subr.mxu0 0.0
      %571 = vmatpush1.msra.mxu0 0.0
      %572 = vmatprep.subr.mxu0 0.0
      %573 = vmatpush1.msra.mxu0 0.0
      %574 = vmatprep.subr.mxu0 0.0
      %575 = vmatpush1.msra.mxu0 0.0
      %576 = vmatprep.subr.mxu0 0.0
      %577 = vmatpush1.msra.mxu0 0.0
      %578 = vmatprep.subr.mxu0 0.0
      %579 = vmatpush1.msra.mxu0 0.0
      %580 = vmatprep.subr.mxu0 0.0
      %581 = vmatpush1.msra.mxu0 0.0
      %582 = vmatprep.subr.mxu0 0.0
      %583 = vmatpush1.msra.mxu0 0.0
      %584 = vmatprep.subr.mxu0 0.0
      %585 = vmatpush1.msra.mxu0 0.0
      %586 = vmatprep.subr.mxu0 0.0
      %587 = vmatpush1.msra.mxu0 0.0
      %588 = vmatprep.subr.mxu0 0.0
      %589 = vmatpush1.msra.mxu0 0.0
      %590 = vmatprep.subr.mxu0 0.0
      %591 = vmatpush1.msra.mxu0 0.0
      %592 = vmatprep.subr.mxu0 0.0
      %593 = vmatpush1.msra.mxu0 0.0
      %594 = vmatprep.subr.mxu0 0.0
      %595 = vmatpush1.msra.mxu0 0.0
      %596 = vmatprep.subr.mxu0 0.0
      %597 = vmatpush1.msra.mxu0 0.0
      %598 = vmatprep.subr.mxu0 0.0
      %599 = vmatpush1.msra.mxu0 0.0
      %600 = vmatprep.subr.mxu0 0.0
      %601 = vmatpush1.msra.mxu0 0.0
      %602 = vmatprep.subr.mxu0 0.0
      %603 = vmatpush1.msra.mxu0 0.0
      %604 = vmatprep.subr.mxu0 0.0
      %605 = vmatpush1.msra.mxu0 0.0
      %606 = vmatprep.subr.mxu0 0.0
      %607 = vmatpush1.msra.mxu0 0.0
      %608 = vmatprep.subr.mxu0 0.0
      %609 = vmatpush1.msra.mxu0 0.0
      %610 = vmatprep.subr.mxu0 0.0
      %611 = vmatpush1.msra.mxu0 0.0
      %612 = vmatprep.subr.mxu0 0.0
      %613 = vmatpush1.msra.mxu0 0.0
      %614 = vmatprep.subr.mxu0 0.0
      %615 = vmatpush1.msra.mxu0 0.0
      %616 = vmatprep.subr.mxu0 0.0
      %617 = vmatpush1.msra.mxu0 0.0
      %618 = vmatprep.mubr.f32.mxu0 0.0
      %619 = vmatmul.mubr.f32.gmra.mrb[0].mxu0 %v549
      %v620 = vpop.f32.mrb[0].mxu0
      %v621 = vadd.f32 0.0, %v620
      %v622 = vpop.f32.mrb[0].mxu0
      %623 = vmatprep.mubr.f32.mxu0 0.0
      %624 = vmatmul.mubr.f32.gmra.mrb[0].mxu0 %v552
      %v625 = vpop.f32.mrb[0].mxu0
      %v626 = vadd.f32 0.0, %v625
      %v627 = vpop.f32.mrb[0].mxu0
      %628 = vdwg.mxu0
      %v630 = vsel %vm547, %v543, 0
      %v633 = vsel %vm547, %v544, 0
      %635 = vmatprep.subr.mxu0 0.0
      %636 = vmatpush1.msra.mxu0 %v415
      %637 = vmatprep.subr.mxu0 0.0
      %638 = vmatpush1.msra.mxu0 %v416
      %639 = vmatprep.subr.mxu0 0.0
      %640 = vmatpush1.msra.mxu0 0.0
      %641 = vmatprep.subr.mxu0 0.0
      %642 = vmatpush1.msra.mxu0 0.0
      %643 = vmatprep.subr.mxu0 0.0
      %644 = vmatpush1.msra.mxu0 0.0
      %645 = vmatprep.subr.mxu0 0.0
      %646 = vmatpush1.msra.mxu0 0.0
      %647 = vmatprep.subr.mxu0 0.0
      %648 = vmatpush1.msra.mxu0 0.0
      %649 = vmatprep.subr.mxu0 0.0
      %650 = vmatpush1.msra.mxu0 0.0
      %651 = vmatprep.subr.mxu0 0.0
      %652 = vmatpush1.msra.mxu0 0.0
      %653 = vmatprep.subr.mxu0 0.0
      %654 = vmatpush1.msra.mxu0 0.0
      %655 = vmatprep.subr.mxu0 0.0
      %656 = vmatpush1.msra.mxu0 0.0
      %657 = vmatprep.subr.mxu0 0.0
      %658 = vmatpush1.msra.mxu0 0.0
      %659 = vmatprep.subr.mxu0 0.0
      %660 = vmatpush1.msra.mxu0 0.0
      %661 = vmatprep.subr.mxu0 0.0
      %662 = vmatpush1.msra.mxu0 0.0
      %663 = vmatprep.subr.mxu0 0.0
      %664 = vmatpush1.msra.mxu0 0.0
      %665 = vmatprep.subr.mxu0 0.0
      %666 = vmatpush1.msra.mxu0 0.0
      %667 = vmatprep.subr.mxu0 0.0
      %668 = vmatpush1.msra.mxu0 0.0
      %669 = vmatprep.subr.mxu0 0.0
      %670 = vmatpush1.msra.mxu0 0.0
      %671 = vmatprep.subr.mxu0 0.0
      %672 = vmatpush1.msra.mxu0 0.0
      %673 = vmatprep.subr.mxu0 0.0
      %674 = vmatpush1.msra.mxu0 0.0
      %675 = vmatprep.subr.mxu0 0.0
      %676 = vmatpush1.msra.mxu0 0.0
      %677 = vmatprep.subr.mxu0 0.0
      %678 = vmatpush1.msra.mxu0 0.0
      %679 = vmatprep.subr.mxu0 0.0
      %680 = vmatpush1.msra.mxu0 0.0
      %681 = vmatprep.subr.mxu0 0.0
      %682 = vmatpush1.msra.mxu0 0.0
      %683 = vmatprep.subr.mxu0 0.0
      %684 = vmatpush1.msra.mxu0 0.0
      %685 = vmatprep.subr.mxu0 0.0
      %686 = vmatpush1.msra.mxu0 0.0
      %687 = vmatprep.subr.mxu0 0.0
      %688 = vmatpush1.msra.mxu0 0.0
      %689 = vmatprep.subr.mxu0 0.0
      %690 = vmatpush1.msra.mxu0 0.0
      %691 = vmatprep.subr.mxu0 0.0
      %692 = vmatpush1.msra.mxu0 0.0
      %693 = vmatprep.subr.mxu0 0.0
      %694 = vmatpush1.msra.mxu0 0.0
      %695 = vmatprep.subr.mxu0 0.0
      %696 = vmatpush1.msra.mxu0 0.0
      %697 = vmatprep.subr.mxu0 0.0
      %698 = vmatpush1.msra.mxu0 0.0
      %699 = vmatprep.mubr.f32.mxu0 0.0
      %700 = vmatmul.mubr.f32.gmra.mrb[0].mxu0 %v630
      %v701 = vpop.f32.mrb[0].mxu0
      %v702 = vadd.f32 %v621, %v701
      %v703 = vpop.f32.mrb[0].mxu0
      %704 = vmatprep.mubr.f32.mxu0 0.0
      %705 = vmatmul.mubr.f32.gmra.mrb[0].mxu0 %v633
      %v706 = vpop.f32.mrb[0].mxu0
      %v707 = vadd.f32 %v626, %v706
      %v708 = vpop.f32.mrb[0].mxu0
      %709 = vdwg.mxu0
      %v710 = vld [vmem:[#allocation2] sm:$0x1]
      %v712 = vlaneseq
      %v713 = vshrl.u32 %v712, 7
      %v714 = vsub.s32 0, %v713
      %v715 = vrot.slane %v710, %v714
      %v717 = vadd.f32 %v702, %v715
      %v718 = vadd.f32 %v707, %v715
      %v719 = vmax.f32 %v717, 0.0
      %v720 = vmax.f32 %v718, 0.0
      %v721 = vld [vmem:[%s4] sm:$0xff]
      %v722 = vld [vmem:[%s4 + $0x8] sm:$0xff]
      %v723 = vld [vmem:[#allocation3] sm:$0x1]
      %v725 = vlaneseq
      %v726 = vshrl.u32 %v725, 7
      %v727 = vsub.s32 0, %v726
      %v728 = vrot.slane %v723, %v727
      %v731 = vsel %vm547, %v721, 0
      %v734 = vsel %vm547, %v722, 0
      %736 = vmatprep.subr.mxu0 0.0
      %737 = vmatpush1.msra.mxu0 %v719
      %738 = vmatprep.subr.mxu0 0.0
      %739 = vmatpush1.msra.mxu0 %v720
      %740 = vmatprep.subr.mxu0 0.0
      %741 = vmatpush1.msra.mxu0 0.0
      %742 = vmatprep.subr.mxu0 0.0
      %743 = vmatpush1.msra.mxu0 0.0
      %744 = vmatprep.subr.mxu0 0.0
      %745 = vmatpush1.msra.mxu0 0.0
      %746 = vmatprep.subr.mxu0 0.0
      %747 = vmatpush1.msra.mxu0 0.0
      %748 = vmatprep.subr.mxu0 0.0
      %749 = vmatpush1.msra.mxu0 0.0
      %750 = vmatprep.subr.mxu0 0.0
      %751 = vmatpush1.msra.mxu0 0.0
      %752 = vmatprep.subr.mxu0 0.0
      %753 = vmatpush1.msra.mxu0 0.0
      %754 = vmatprep.subr.mxu0 0.0
      %755 = vmatpush1.msra.mxu0 0.0
      %756 = vmatprep.subr.mxu0 0.0
      %757 = vmatpush1.msra.mxu0 0.0
      %758 = vmatprep.subr.mxu0 0.0
      %759 = vmatpush1.msra.mxu0 0.0
      %760 = vmatprep.subr.mxu0 0.0
      %761 = vmatpush1.msra.mxu0 0.0
      %762 = vmatprep.subr.mxu0 0.0
      %763 = vmatpush1.msra.mxu0 0.0
      %764 = vmatprep.subr.mxu0 0.0
      %765 = vmatpush1.msra.mxu0 0.0
      %766 = vmatprep.subr.mxu0 0.0
      %767 = vmatpush1.msra.mxu0 0.0
      %768 = vmatprep.subr.mxu0 0.0
      %769 = vmatpush1.msra.mxu0 0.0
      %770 = vmatprep.subr.mxu0 0.0
      %771 = vmatpush1.msra.mxu0 0.0
      %772 = vmatprep.subr.mxu0 0.0
      %773 = vmatpush1.msra.mxu0 0.0
      %774 = vmatprep.subr.mxu0 0.0
      %775 = vmatpush1.msra.mxu0 0.0
      %776 = vmatprep.subr.mxu0 0.0
      %777 = vmatpush1.msra.mxu0 0.0
      %778 = vmatprep.subr.mxu0 0.0
      %779 = vmatpush1.msra.mxu0 0.0
      %780 = vmatprep.subr.mxu0 0.0
      %781 = vmatpush1.msra.mxu0 0.0
      %782 = vmatprep.subr.mxu0 0.0
      %783 = vmatpush1.msra.mxu0 0.0
      %784 = vmatprep.subr.mxu0 0.0
      %785 = vmatpush1.msra.mxu0 0.0
      %786 = vmatprep.subr.mxu0 0.0
      %787 = vmatpush1.msra.mxu0 0.0
      %788 = vmatprep.subr.mxu0 0.0
      %789 = vmatpush1.msra.mxu0 0.0
      %790 = vmatprep.subr.mxu0 0.0
      %791 = vmatpush1.msra.mxu0 0.0
      %792 = vmatprep.subr.mxu0 0.0
      %793 = vmatpush1.msra.mxu0 0.0
      %794 = vmatprep.subr.mxu0 0.0
      %795 = vmatpush1.msra.mxu0 0.0
      %796 = vmatprep.subr.mxu0 0.0
      %797 = vmatpush1.msra.mxu0 0.0
      %798 = vmatprep.subr.mxu0 0.0
      %799 = vmatpush1.msra.mxu0 0.0
      %800 = vmatprep.mubr.f32.mxu0 0.0
      %801 = vmatmul.mubr.f32.gmra.mrb[0].mxu0 %v731
      %v802 = vpop.f32.mrb[0].mxu0
      %v803 = vadd.f32 %v728, %v802
      %v804 = vpop.f32.mrb[0].mxu0
      %805 = vmatprep.mubr.f32.mxu0 0.0
      %806 = vmatmul.mubr.f32.gmra.mrb[0].mxu0 %v734
      %v807 = vpop.f32.mrb[0].mxu0
      %v808 = vadd.f32 %v728, %v807
      %v809 = vpop.f32.mrb[0].mxu0
      %810 = vdwg.mxu0
      %v811 = vsub.f32 %v803, %v803
      %v812 = vsub.f32 %v808, %v808
      %v813 = vmul.f32 %v811, 1.442695
      %v814 = vpow.pop %v813
      %v815 = vmul.f32 %v812, 1.442695
      %v816 = vpow.pop %v815
      %v817 = vadd.f32 %v814, 1.0
      %v818 = vadd.f32 %v816, 1.0
      %820 = vset.pattern.permute.xlu0 0
      %821 = vperm.xlu0 %820, %v817
      %v822 = vpop.permute.xlu0 %821
      %825 = vset.pattern.permute.xlu0 0
      %826 = vperm.xlu0 %825, %v818
      %v827 = vpop.permute.xlu0 %826
      %v829 = vmul.f32 %v256, %v822
      %v830 = vmul.f32 %v257, %v827
      %v831 = vmul.f32 %v258, %v822
      %v832 = vmul.f32 %v259, %v827
      %v833 = vmul.f32 %v260, %v822
      %v834 = vmul.f32 %v261, %v827
      %v835 = vmul.f32 %v262, %v822
      %v836 = vmul.f32 %v263, %v827
      %v837 = vmul.f32 %v264, %v822
      %v838 = vmul.f32 %v265, %v827
      %v839 = vmul.f32 %v266, %v822
      %v840 = vmul.f32 %v267, %v827
      %v841 = vmul.f32 %v268, %v822
      %v842 = vmul.f32 %v269, %v827
      %v843 = vmul.f32 %v270, %v822
      %v844 = vmul.f32 %v271, %v827
      %v845 = vmul.f32 %v272, %v822
      %v846 = vmul.f32 %v273, %v827
      %v847 = vmul.f32 %v274, %v822
      %v848 = vmul.f32 %v275, %v827
      %v849 = vmul.f32 %v276, %v822
      %v850 = vmul.f32 %v277, %v827
      %v851 = vmul.f32 %v278, %v822
      %v852 = vmul.f32 %v279, %v827
      %v853 = vmul.f32 %v280, %v822
      %v854 = vmul.f32 %v281, %v827
      %v855 = vmul.f32 %v282, %v822
      %v856 = vmul.f32 %v283, %v827
      %v857 = vmul.f32 %v284, %v822
      %v858 = vmul.f32 %v285, %v827
      %v859 = vmul.f32 %v286, %v822
      %v860 = vmul.f32 %v287, %v827
      %861 = vst.msk [vmem:[%s255] sm:$0xff] %vm288, %v829
      %862 = vst.msk [vmem:[%s255 + $0x8] sm:$0xff] %vm288, %v830
      %863 = vst.msk [vmem:[%s255 + $0x10] sm:$0xff] %vm288, %v831
      %864 = vst.msk [vmem:[%s255 + $0x18] sm:$0xff] %vm288, %v832
      %865 = vst.msk [vmem:[%s255 + $0x20] sm:$0xff] %vm288, %v833
      %866 = vst.msk [vmem:[%s255 + $0x28] sm:$0xff] %vm288, %v834
      %867 = vst.msk [vmem:[%s255 + $0x30] sm:$0xff] %vm288, %v835
      %868 = vst.msk [vmem:[%s255 + $0x38] sm:$0xff] %vm288, %v836
      %869 = vst.msk [vmem:[%s255 + $0x40] sm:$0xff] %vm288, %v837
      %870 = vst.msk [vmem:[%s255 + $0x48] sm:$0xff] %vm288, %v838
      %871 = vst.msk [vmem:[%s255 + $0x50] sm:$0xff] %vm288, %v839
      %872 = vst.msk [vmem:[%s255 + $0x58] sm:$0xff] %vm288, %v840
      %873 = vst.msk [vmem:[%s255 + $0x60] sm:$0xff] %vm288, %v841
      %874 = vst.msk [vmem:[%s255 + $0x68] sm:$0xff] %vm288, %v842
      %875 = vst.msk [vmem:[%s255 + $0x70] sm:$0xff] %vm288, %v843
      %876 = vst.msk [vmem:[%s255 + $0x78] sm:$0xff] %vm288, %v844
      %877 = vst.msk [vmem:[%s255 + $0x80] sm:$0xff] %vm288, %v845
      %878 = vst.msk [vmem:[%s255 + $0x88] sm:$0xff] %vm288, %v846
      %879 = vst.msk [vmem:[%s255 + $0x90] sm:$0xff] %vm288, %v847
      %880 = vst.msk [vmem:[%s255 + $0x98] sm:$0xff] %vm288, %v848
      %881 = vst.msk [vmem:[%s255 + $0xa0] sm:$0xff] %vm288, %v849
      %882 = vst.msk [vmem:[%s255 + $0xa8] sm:$0xff] %vm288, %v850
      %883 = vst.msk [vmem:[%s255 + $0xb0] sm:$0xff] %vm288, %v851
      %884 = vst.msk [vmem:[%s255 + $0xb8] sm:$0xff] %vm288, %v852
      %885 = vst.msk [vmem:[%s255 + $0xc0] sm:$0xff] %vm288, %v853
      %886 = vst.msk [vmem:[%s255 + $0xc8] sm:$0xff] %vm288, %v854
      %887 = vst.msk [vmem:[%s255 + $0xd0] sm:$0xff] %vm288, %v855
      %888 = vst.msk [vmem:[%s255 + $0xd8] sm:$0xff] %vm288, %v856
      %889 = vst.msk [vmem:[%s255 + $0xe0] sm:$0xff] %vm288, %v857
      %890 = vst.msk [vmem:[%s255 + $0xe8] sm:$0xff] %vm288, %v858
      %891 = vst.msk [vmem:[%s255 + $0xf0] sm:$0xff] %vm288, %v859
      %892 = vst.msk [vmem:[%s255 + $0xf8] sm:$0xff] %vm288, %v860
      %p893 = scmp.lt.s32.totalorder %s21, 1
      %s894 = scalar_select %p893, %s21, 1
      %s895 = smul.addr %s894, 32
      %s896 = smul.addr %s895, 8
      %s897 = scalar_lea.vmem %s6, %s896
      // Predicated region
      $region45: #{tpu_custom_call.1} parent=43 // pred_check
        %p898 = pneg %p170
      $region46: #{tpu_custom_call.1} parent=43 // pred_check_branch
        %900 = sbr.rel (%p898) target = $region48
      $region47: #{tpu_custom_call.1} parent=43 // pred_region
        _
      $region48: #{tpu_custom_call.1} parent=43 // pred_fallthru
        _
    $region44: #{tpu_custom_call.1} parent=5 // pred_fallthru
      _
    %p901 = scmp.le.s32.totalorder 2, %s16
    // Predicated region
    $region49: #{tpu_custom_call.1} parent=5 // pred_check
      %p902 = pneg %p901
    $region50: #{tpu_custom_call.1} parent=5 // pred_check_branch
      %904 = sbr.rel (%p902) target = $region52
    $region51: #{tpu_custom_call.1} parent=5 // pred_region
      %s905 = ssub.s32 %s16, 2
      // Predicated region
      $region53: #{tpu_custom_call.1} parent=51 // pred_check
        %p906 = pneg %p176
      $region54: #{tpu_custom_call.1} parent=51 // pred_check_branch
        %908 = sbr.rel (%p906) target = $region56
      $region55: #{tpu_custom_call.1} parent=51 // pred_region
        %p909 = scmp.lt.s32.totalorder %s22, 1
        %s910 = scalar_select %p909, %s22, 1
        %s911 = smul.addr %s910, 32
        %s912 = smul.addr %s911, 8
        %s913 = scalar_lea.vmem %s6, %s912
      $region56: #{tpu_custom_call.1} parent=51 // pred_fallthru
        _
    $region52: #{tpu_custom_call.1} parent=5 // pred_fallthru
      _
  $region6: #{tpu_custom_call.1} parent=0 // loop_footer
    %s20 = sadd.s32 1, %s16
  $region7: #{tpu_custom_call.1} parent=0 // loop_footer_branch
    %15 = sbr.rel target = $region3
  $region8: #{tpu_custom_call.1} parent=0 // loop_exit
    _

</llo_original>
